<compile_context>
chip_gen: v7x
topology: tpu7x:2x2x1
jax: 0.10.0
libtpu: 0.0.40
codegen_flags: <defaults>
</compile_context>

<pallas_src>
import functools
import math

import jax
import jax.numpy as jnp
from jax.experimental import pallas as pl
from jax.experimental.pallas import tpu as pltpu

_LANES = 128                        # lane (fast) axis width
_TARGET_BLOCK_BYTES = 2 * 1024 * 1024   # ~2 MiB per block (8 MiB double-buffered)


def _round_up(x, m):
    return -(-x // m) * m


def _sublane_pack(dtype) -> int:
    """Row alignment matching the dtype's sublane packing (8 f32 / 16 bf16 / 32 i8)."""
    return max(8, 32 // jnp.dtype(dtype).itemsize)


# ----------------------------------------------------------------------------
# Kernel
# ----------------------------------------------------------------------------
def _inv_leaky_relu_kernel(x_ref, y_ref, *, scale):
    """Elementwise y = x * (1 if x >= 0 else scale), lane-dense tile."""
    x = x_ref[...]
    if 0.0 < scale <= 1.0:
        # For 0 < scale <= 1:  max(x, scale*x) == leaky_relu(x, scale)
        y = jnp.maximum(x, x * scale)
    elif scale >= 1.0:
        # Inverse path uses scale = 1/alpha >= 1: min picks x for x>=0, scale*x for x<0.
        y = jnp.minimum(x, x * scale)
    else:
        y = jnp.where(x >= 0, x, x * scale)
    y_ref[...] = y


# ----------------------------------------------------------------------------
# Wrapper
# ----------------------------------------------------------------------------
def _run_elementwise(x, scale):
    """View x as a lane-dense (rows, 128) slab, run the tiled kernel, restore shape."""
    orig_shape = x.shape
    n = math.prod(orig_shape)
    if n == 0:
        return x

    itemsize = jnp.dtype(x.dtype).itemsize
    sub = _sublane_pack(x.dtype)

    if n % _LANES == 0:
        # Fast path: pure bitcast, no pad, no trailing slice.
        rows = n // _LANES
        x2 = x.reshape(rows, _LANES)
        padded = False
    else:
        # Ragged path: pad only to the next sublane-aligned row count.
        rows = _round_up(-(-n // _LANES), sub)
        x2 = jnp.pad(x.reshape(-1), (0, rows * _LANES - n)).reshape(rows, _LANES)
        padded = True

    # ~2 MiB blocks, rows-per-block a multiple of the sublane pack factor.
    max_rows = max(sub, (_TARGET_BLOCK_BYTES // (_LANES * itemsize)) // sub * sub)
    tb = min(max_rows, _round_up(rows, sub))
    if tb > rows:
        tb = rows                       # full-extent block (always a legal block shape)
    # v7x: make sure the "parallel" axis has >= 2 blocks when there is enough work.
    if pl.cdiv(rows, tb) == 1 and rows * _LANES * itemsize >= (1 << 20):
        tb = max(sub, _round_up(pl.cdiv(rows, 2), sub))

    grid = (pl.cdiv(rows, tb),)
    kernel = functools.partial(_inv_leaky_relu_kernel, scale=float(scale))

    y2 = pl.pallas_call(
        kernel,
        out_shape=jax.ShapeDtypeStruct((rows, _LANES), x2.dtype),
        grid=grid,
        in_specs=[pl.BlockSpec((tb, _LANES), lambda i: (i, 0))],
        out_specs=pl.BlockSpec((tb, _LANES), lambda i: (i, 0)),
        compiler_params=pltpu.CompilerParams(
            dimension_semantics=("parallel",)),
        cost_estimate=pl.CostEstimate(
            flops=2 * rows * _LANES,
            transcendentals=0,
            bytes_accessed=2 * rows * _LANES * itemsize),
    )(x2)

    if padded:
        return y2.reshape(-1)[:n].reshape(orig_shape)
    return y2.reshape(orig_shape)


@functools.partial(jax.jit, static_argnames=("alpha", "reverse"))
def inv_leaky_relu(x, alpha=0.9, reverse=False):
    """Pallas implementation of InvLeakyRelu.forward / .reverse."""
    if reverse:
        # reverse: divide negatives by alpha  (== multiply by 1/alpha)
        return _run_elementwise(x, scale=1.0 / alpha)
    h = _run_elementwise(x, scale=alpha)
    # Reference returns (h, 0.0); return a scalar array so downstream jit code is happy.
    return h, jnp.zeros((), dtype=h.dtype)


# ----------------------------------------------------------------------------
if __name__ == "__main__":
    B, C, H, W = 2, 4, 16, 16
    alpha = 0.9

    key = jax.random.PRNGKey(0)
    x = jax.random.normal(key, (B, C, H, W), dtype=jnp.float32)

    # forward
    h, logdet = inv_leaky_relu(x, alpha=alpha, reverse=False)
    h = jax.block_until_ready(h)
    assert h.shape == x.shape
    assert float(logdet) == 0.0

    # check against the pure-JAX reference
    scaling = (x >= 0).astype(x.dtype) + (x < 0).astype(x.dtype) * alpha
    h_ref = x * scaling
    assert jnp.allclose(h, h_ref, atol=1e-6), "forward mismatch vs reference"

    # reverse inverts forward
    x_rec = jax.block_until_ready(inv_leaky_relu(h, alpha=alpha, reverse=True))
    assert jnp.allclose(x_rec, x, atol=1e-5), "inverse did not recover input"

    print("KERNEL_OK")
</pallas_src>

<mosaic_0001>
module attributes {stable_mosaic.version = 11 : i64} {
  func.func @_inv_leaky_relu_kernel(%arg0: i32, %arg1: memref<16x128xf32, #tpu.memory_space<vmem>>, %arg2: memref<16x128xf32, #tpu.memory_space<vmem>>) attributes {dimension_semantics = [#tpu.dimension_semantics<parallel>], iteration_bounds = array<i64: 1>, scalar_prefetch = 0 : i64, scratch_operands = 0 : i64, tpu.core_type = #tpu.core_type<tc>, window_params = [{transform_indices = @transform_0, window_bounds = array<i64: 16, 128>}, {transform_indices = @transform_1, window_bounds = array<i64: 16, 128>}]} {
    %c0 = arith.constant 0 : index
    %c0_0 = arith.constant 0 : index
    %0 = vector.load %arg1[%c0, %c0_0] : memref<16x128xf32, #tpu.memory_space<vmem>>, vector<16x128xf32>
    %cst = arith.constant 0.899999976 : f32
    %1 = vector.broadcast %cst : f32 to vector<16x128xf32>
    %2 = arith.mulf %0, %1 : vector<16x128xf32>
    %3 = arith.maximumf %0, %2 : vector<16x128xf32>
    %c0_1 = arith.constant 0 : index
    %c0_2 = arith.constant 0 : index
    %4 = vector.load %arg2[%c0_1, %c0_2] : memref<16x128xf32, #tpu.memory_space<vmem>>, vector<16x128xf32>
    tpu.vector_store %arg2[%c0_1, %c0_2], %3 {strides = array<i32>} : memref<16x128xf32, #tpu.memory_space<vmem>>, vector<16x128xf32>,
    return
  }
  func.func @transform_0(%arg0: i32) -> (i32, i32) {
    %c0_i32 = arith.constant 0 : i32
    %c0_i32_0 = arith.constant 0 : i32
    return %arg0, %c0_i32 : i32, i32
  }
  func.func @transform_1(%arg0: i32) -> (i32, i32) {
    %c0_i32 = arith.constant 0 : i32
    %c0_i32_0 = arith.constant 0 : i32
    return %arg0, %c0_i32 : i32, i32
  }
}

</mosaic_0001>

<llo_original>
// kernel: inv_leaky_relu.1
$region0: #{inv_leaky_relu.1}
  #allocation0 [shape = 'u32[]', space=smem, size = 0x4, offset = 0x4, fixed_abs, tag = 'smem constant byte address 0x4 - core index']
  #allocation1 [shape = 'u32[144,128]{1,0:T(1,128)}', space=vmem, size = 0x12000, scoped, tag = 'internal scratch']
  %s0 = inlined_call_operand.vmem [shape: f32[16,128], index: 0, kind: input, shape index: {}]
  %s1 = inlined_call_operand.vmem [shape: f32[16,128], index: 1, kind: output, shape index: {}]
  %s2 = sld [smem:[#allocation0]]
  $region14: #{inv_leaky_relu.1} parent=0
    _
  %s4 = ssub.s32 1, %s2
  %s5 = scalar_select 0, %s4, %s2
  // Predicated region
  $region2: #{inv_leaky_relu.1} parent=0 // pred_check
    _
  $region3: #{inv_leaky_relu.1} parent=0 // pred_check_branch
    %7 = sbr.rel (0) target = $region5
  $region4: #{inv_leaky_relu.1} parent=0 // pred_region
    _
  $region5: #{inv_leaky_relu.1} parent=0 // pred_fallthru
    _
  %v8 = vld [vmem:[%s0] sm:$0xff]
  %v9 = vld [vmem:[%s0 + $0x8] sm:$0xff]
  %v10 = vmul.f32 %v8, 0.9
  %v11 = vmul.f32 %v9, 0.9
  %v12 = vmax.f32 %v8, %v10
  %v13 = vmax.f32 %v9, %v11
  %14 = vst [vmem:[%s1] sm:$0xff] %v12
  %15 = vst [vmem:[%s1 + $0x8] sm:$0xff] %v13
  // Predicated region
  $region6: #{inv_leaky_relu.1} parent=0 // pred_check
    _
  $region7: #{inv_leaky_relu.1} parent=0 // pred_check_branch
    %17 = sbr.rel (0) target = $region9
  $region8: #{inv_leaky_relu.1} parent=0 // pred_region
    _
  $region9: #{inv_leaky_relu.1} parent=0 // pred_fallthru
    _
  // Predicated region
  $region10: #{inv_leaky_relu.1} parent=0 // pred_check
    _
  $region11: #{inv_leaky_relu.1} parent=0 // pred_check_branch
    %19 = sbr.rel (0) target = $region13
  $region12: #{inv_leaky_relu.1} parent=0 // pred_region
    _
  $region13: #{inv_leaky_relu.1} parent=0 // pred_fallthru
    _

</llo_original>
